<compile_context>
chip_gen: v5e
topology: v5e:2x2
jax: 0.10.0
libtpu: 0.0.40
codegen_flags: <defaults>
</compile_context>

<pallas_src>
import jax
import jax.numpy as jnp
from jax.experimental import pallas as pl
from jax.experimental.pallas import tpu as pltpu

EMB_DIM = 5
HIDDEN_DIM = 5
VOCAB = 11
NUM_CLASSES = 2


def make_lstm_kernel(B, T):
    """Returns a kernel closed over static (B, T).

    Kernel ref shapes:
      ids_ref : (T*B, 1) int32   -- token ids, time-major flattened
      emb_ref : (VOCAB, E) f32
      wih_ref : (E, 4H) f32      -- gate-stacked (i|f|g|o) along lanes
      whh_ref : (H, 4H) f32
      b_ref   : (1, 4H) f32      -- b_ih + b_hh
      wlin_ref: (H, 2)  f32
      blin_ref: (1, 2)  f32
      o_ref   : (B, 2)  f32
    """

    def kernel(ids_ref, emb_ref, wih_ref, whh_ref, b_ref, wlin_ref, blin_ref, o_ref):
        VOC, E = emb_ref.shape
        H = whh_ref.shape[0]
        BT = B * T

        # 1) Embedding lookup as a one-hot matmul (gather fused in-kernel).
        ids = ids_ref[...]                                                  # (T*B, 1)
        onehot = (jax.lax.broadcasted_iota(jnp.int32, (BT, VOC), 1)
                  == ids).astype(jnp.float32)                              # (T*B, VOC)
        x_emb = jnp.dot(onehot, emb_ref[...],
                        preferred_element_type=jnp.float32)                # (T*B, E)

        # 2) Hoisted input projection for all timesteps at once, bias folded in.
        xg = jnp.dot(x_emb, wih_ref[...],
                     preferred_element_type=jnp.float32) + b_ref[...]      # (T*B, 4H)

        whh = whh_ref[...]
        h = jnp.zeros((B, H), jnp.float32)
        c = jnp.zeros((B, H), jnp.float32)

        # 3) Recurrence: exactly one fused (B,H)@(H,4H) MXU op per timestep.
        #    T is a small static trip count -> unrolled Python loop.
        for t in range(T):
            gates = xg[t * B:(t + 1) * B, :] + jnp.dot(
                h, whh, preferred_element_type=jnp.float32)                # (B, 4H)
            i_g = jax.nn.sigmoid(gates[:, 0:H])
            f_g = jax.nn.sigmoid(gates[:, H:2 * H])
            g_g = jnp.tanh(gates[:, 2 * H:3 * H])
            o_g = jax.nn.sigmoid(gates[:, 3 * H:4 * H])
            c = f_g * c + i_g * g_g
            h = o_g * jnp.tanh(c)

        # 4) Final Linear on the last hidden state.
        o_ref[...] = (jnp.dot(h, wlin_ref[...],
                              preferred_element_type=jnp.float32) + blin_ref[...])

    return kernel


def init_params(key):
    """Deterministic parameter init with shapes matching the PyTorch module."""
    ks = jax.random.split(key, 7)
    H, E = HIDDEN_DIM, EMB_DIM
    bound = 1.0 / jnp.sqrt(jnp.float32(H))
    return {
        "emb": jax.random.normal(ks[0], (VOCAB, E), jnp.float32),
        # PyTorch LSTM layout: weight_ih_l0 (4H, E), weight_hh_l0 (4H, H), biases (4H,)
        "w_ih": jax.random.uniform(ks[1], (4 * H, E), jnp.float32, -bound, bound),
        "w_hh": jax.random.uniform(ks[2], (4 * H, H), jnp.float32, -bound, bound),
        "b_ih": jax.random.uniform(ks[3], (4 * H,), jnp.float32, -bound, bound),
        "b_hh": jax.random.uniform(ks[4], (4 * H,), jnp.float32, -bound, bound),
        # Linear(H, 2): weight (2, H), bias (2,)
        "w_lin": jax.random.uniform(ks[5], (NUM_CLASSES, H), jnp.float32, -bound, bound),
        "b_lin": jax.random.uniform(ks[6], (NUM_CLASSES,), jnp.float32, -bound, bound),
    }


def model_forward(x_ids, params):
    """x_ids: (B, T) int32 token indices in [0, 11). Returns (B, 2) f32 logits."""
    B, T = x_ids.shape
    H = HIDDEN_DIM

    # Cheap layout glue (no activation materialization):
    ids_tb = x_ids.T.reshape(T * B, 1).astype(jnp.int32)          # time-major ids
    wih = params["w_ih"].T                                        # (E, 4H)  gates i|f|g|o
    whh = params["w_hh"].T                                        # (H, 4H)
    b = (params["b_ih"] + params["b_hh"]).reshape(1, 4 * H)       # (1, 4H)
    wlin = params["w_lin"].T                                      # (H, 2)
    blin = params["b_lin"].reshape(1, NUM_CLASSES)                # (1, 2)

    vmem = pl.BlockSpec(memory_space=pltpu.MemorySpace.VMEM)
    out = pl.pallas_call(
        make_lstm_kernel(B, T),
        out_shape=jax.ShapeDtypeStruct((B, NUM_CLASSES), jnp.float32),
        in_specs=[vmem] * 7,
        out_specs=vmem,
    )(ids_tb, params["emb"], wih, whh, b, wlin, blin)
    return out


def ref_forward(x_ids, params):
    """Pure-JAX reference mirroring torch semantics (for correctness check)."""
    H = HIDDEN_DIM
    x_emb = params["emb"][x_ids]
    B, T, _ = x_emb.shape
    w_ih, w_hh = params["w_ih"], params["w_hh"]
    b = params["b_ih"] + params["b_hh"]
    h = jnp.zeros((B, H), jnp.float32)
    c = jnp.zeros((B, H), jnp.float32)
    for t in range(T):
        gates = x_emb[:, t, :] @ w_ih.T + h @ w_hh.T + b
        i = jax.nn.sigmoid(gates[:, 0:H])
        f = jax.nn.sigmoid(gates[:, H:2 * H])
        g = jnp.tanh(gates[:, 2 * H:3 * H])
        o = jax.nn.sigmoid(gates[:, 3 * H:4 * H])
        c = f * c + i * g
        h = o * jnp.tanh(c)
    return h @ params["w_lin"].T + params["b_lin"]


if __name__ == "__main__":
    key = jax.random.PRNGKey(0)
    pkey, xkey = jax.random.split(key)
    params = init_params(pkey)

    B, T = 2, 8
    x_ids = jax.random.randint(xkey, (B, T), 0, VOCAB, dtype=jnp.int32)

    logits = model_forward(x_ids, params)
    logits = jax.block_until_ready(logits)

    expected = ref_forward(x_ids, params)
    assert logits.shape == (B, NUM_CLASSES)
    assert jnp.allclose(logits, expected, atol=1e-5, rtol=1e-5), (logits, expected)

    # predict() equivalent: argmax over the class dim (plain JAX glue).
    _ = jnp.argmax(logits, axis=-1)

    print("KERNEL_OK")
</pallas_src>

<mosaic_0001>
module attributes {stable_mosaic.version = 11 : i64} {
  func.func @kernel(%arg0: memref<16x1xi32, #tpu.memory_space<vmem>>, %arg1: memref<11x5xf32, #tpu.memory_space<vmem>>, %arg2: memref<5x20xf32, #tpu.memory_space<vmem>>, %arg3: memref<5x20xf32, #tpu.memory_space<vmem>>, %arg4: memref<1x20xf32, #tpu.memory_space<vmem>>, %arg5: memref<5x2xf32, #tpu.memory_space<vmem>>, %arg6: memref<1x2xf32, #tpu.memory_space<vmem>>, %arg7: memref<2x2xf32, #tpu.memory_space<vmem>>) attributes {dimension_semantics = [], scalar_prefetch = 0 : i64, scratch_operands = 0 : i64, tpu.core_type = #tpu.core_type<tc>} {
    %c0 = arith.constant 0 : index
    %c0_0 = arith.constant 0 : index
    %0 = vector.load %arg0[%c0, %c0_0] : memref<16x1xi32, #tpu.memory_space<vmem>>, vector<16x1xi32>
    %1 = tpu.iota {dimensions = array<i32: 1>} : vector<16x11xi32>
    %2 = vector.broadcast %0 : vector<16x1xi32> to vector<16x11xi32>
    %3 = arith.cmpi eq, %1, %2 : vector<16x11xi32>
    %4 = arith.extui %3 : vector<16x11xi1> to vector<16x11xi32>
    %5 = arith.sitofp %4 : vector<16x11xi32> to vector<16x11xf32>
    %c0_1 = arith.constant 0 : index
    %c0_2 = arith.constant 0 : index
    %6 = vector.load %arg1[%c0_1, %c0_2] : memref<11x5xf32, #tpu.memory_space<vmem>>, vector<11x5xf32>
    %cst = arith.constant dense<0.000000e+00> : vector<16x5xf32>
    %7 = tpu.matmul %5, %6, %cst {dimension_numbers = #tpu.dot_dimension_numbers<[1], [0], [0], [1], [0, 0, 1, 1], [], []>} : vector<16x11xf32>, vector<11x5xf32>, vector<16x5xf32> -> vector<16x5xf32>
    %c0_3 = arith.constant 0 : index
    %c0_4 = arith.constant 0 : index
    %8 = vector.load %arg2[%c0_3, %c0_4] : memref<5x20xf32, #tpu.memory_space<vmem>>, vector<5x20xf32>
    %cst_5 = arith.constant dense<0.000000e+00> : vector<16x20xf32>
    %9 = tpu.matmul %7, %8, %cst_5 {dimension_numbers = #tpu.dot_dimension_numbers<[1], [0], [0], [1], [0, 0, 1, 1], [], []>} : vector<16x5xf32>, vector<5x20xf32>, vector<16x20xf32> -> vector<16x20xf32>
    %c0_6 = arith.constant 0 : index
    %c0_7 = arith.constant 0 : index
    %10 = vector.load %arg4[%c0_6, %c0_7] : memref<1x20xf32, #tpu.memory_space<vmem>>, vector<1x20xf32>
    %11 = vector.broadcast %10 : vector<1x20xf32> to vector<16x20xf32>
    %12 = arith.addf %9, %11 : vector<16x20xf32>
    %c0_8 = arith.constant 0 : index
    %c0_9 = arith.constant 0 : index
    %13 = vector.load %arg3[%c0_8, %c0_9] : memref<5x20xf32, #tpu.memory_space<vmem>>, vector<5x20xf32>
    %cst_10 = arith.constant 0.000000e+00 : f32
    %14 = vector.broadcast %cst_10 : f32 to vector<2x5xf32>
    %cst_11 = arith.constant 0.000000e+00 : f32
    %15 = vector.broadcast %cst_11 : f32 to vector<2x5xf32>
    %16 = vector.extract_strided_slice %12 {offsets = [0, 0], sizes = [2, 20], strides = [1, 1]} : vector<16x20xf32> to vector<2x20xf32>
    %cst_12 = arith.constant dense<0.000000e+00> : vector<2x20xf32>
    %17 = tpu.matmul %14, %13, %cst_12 {dimension_numbers = #tpu.dot_dimension_numbers<[1], [0], [0], [1], [0, 0, 1, 1], [], []>} : vector<2x5xf32>, vector<5x20xf32>, vector<2x20xf32> -> vector<2x20xf32>
    %18 = arith.addf %16, %17 : vector<2x20xf32>
    %19 = vector.extract_strided_slice %18 {offsets = [0, 0], sizes = [2, 5], strides = [1, 1]} : vector<2x20xf32> to vector<2x5xf32>
    %20 = arith.negf %19 : vector<2x5xf32>
    %21 = math.exp %20 : vector<2x5xf32>
    %cst_13 = arith.constant 1.000000e+00 : f32
    %22 = vector.broadcast %cst_13 : f32 to vector<2x5xf32>
    %23 = arith.addf %22, %21 : vector<2x5xf32>
    %24 = arith.divf %22, %23 : vector<2x5xf32>
    %25 = vector.extract_strided_slice %18 {offsets = [0, 5], sizes = [2, 5], strides = [1, 1]} : vector<2x20xf32> to vector<2x5xf32>
    %26 = arith.negf %25 : vector<2x5xf32>
    %27 = math.exp %26 : vector<2x5xf32>
    %cst_14 = arith.constant 1.000000e+00 : f32
    %28 = vector.broadcast %cst_14 : f32 to vector<2x5xf32>
    %29 = arith.addf %28, %27 : vector<2x5xf32>
    %30 = arith.divf %28, %29 : vector<2x5xf32>
    %31 = vector.extract_strided_slice %18 {offsets = [0, 10], sizes = [2, 5], strides = [1, 1]} : vector<2x20xf32> to vector<2x5xf32>
    %32 = math.tanh %31 : vector<2x5xf32>
    %33 = vector.extract_strided_slice %18 {offsets = [0, 15], sizes = [2, 5], strides = [1, 1]} : vector<2x20xf32> to vector<2x5xf32>
    %34 = arith.negf %33 : vector<2x5xf32>
    %35 = math.exp %34 : vector<2x5xf32>
    %cst_15 = arith.constant 1.000000e+00 : f32
    %36 = vector.broadcast %cst_15 : f32 to vector<2x5xf32>
    %37 = arith.addf %36, %35 : vector<2x5xf32>
    %38 = arith.divf %36, %37 : vector<2x5xf32>
    %39 = arith.mulf %30, %15 : vector<2x5xf32>
    %40 = arith.mulf %24, %32 : vector<2x5xf32>
    %41 = arith.addf %39, %40 : vector<2x5xf32>
    %42 = math.tanh %41 : vector<2x5xf32>
    %43 = arith.mulf %38, %42 : vector<2x5xf32>
    %44 = vector.extract_strided_slice %12 {offsets = [2, 0], sizes = [2, 20], strides = [1, 1]} : vector<16x20xf32> to vector<2x20xf32>
    %cst_16 = arith.constant dense<0.000000e+00> : vector<2x20xf32>
    %45 = tpu.matmul %43, %13, %cst_16 {dimension_numbers = #tpu.dot_dimension_numbers<[1], [0], [0], [1], [0, 0, 1, 1], [], []>} : vector<2x5xf32>, vector<5x20xf32>, vector<2x20xf32> -> vector<2x20xf32>
    %46 = arith.addf %44, %45 : vector<2x20xf32>
    %47 = vector.extract_strided_slice %46 {offsets = [0, 0], sizes = [2, 5], strides = [1, 1]} : vector<2x20xf32> to vector<2x5xf32>
    %48 = arith.negf %47 : vector<2x5xf32>
    %49 = math.exp %48 : vector<2x5xf32>
    %cst_17 = arith.constant 1.000000e+00 : f32
    %50 = vector.broadcast %cst_17 : f32 to vector<2x5xf32>
    %51 = arith.addf %50, %49 : vector<2x5xf32>
    %52 = arith.divf %50, %51 : vector<2x5xf32>
    %53 = vector.extract_strided_slice %46 {offsets = [0, 5], sizes = [2, 5], strides = [1, 1]} : vector<2x20xf32> to vector<2x5xf32>
    %54 = arith.negf %53 : vector<2x5xf32>
    %55 = math.exp %54 : vector<2x5xf32>
    %cst_18 = arith.constant 1.000000e+00 : f32
    %56 = vector.broadcast %cst_18 : f32 to vector<2x5xf32>
    %57 = arith.addf %56, %55 : vector<2x5xf32>
    %58 = arith.divf %56, %57 : vector<2x5xf32>
    %59 = vector.extract_strided_slice %46 {offsets = [0, 10], sizes = [2, 5], strides = [1, 1]} : vector<2x20xf32> to vector<2x5xf32>
    %60 = math.tanh %59 : vector<2x5xf32>
    %61 = vector.extract_strided_slice %46 {offsets = [0, 15], sizes = [2, 5], strides = [1, 1]} : vector<2x20xf32> to vector<2x5xf32>
    %62 = arith.negf %61 : vector<2x5xf32>
    %63 = math.exp %62 : vector<2x5xf32>
    %cst_19 = arith.constant 1.000000e+00 : f32
    %64 = vector.broadcast %cst_19 : f32 to vector<2x5xf32>
    %65 = arith.addf %64, %63 : vector<2x5xf32>
    %66 = arith.divf %64, %65 : vector<2x5xf32>
    %67 = arith.mulf %58, %41 : vector<2x5xf32>
    %68 = arith.mulf %52, %60 : vector<2x5xf32>
    %69 = arith.addf %67, %68 : vector<2x5xf32>
    %70 = math.tanh %69 : vector<2x5xf32>
    %71 = arith.mulf %66, %70 : vector<2x5xf32>
    %72 = vector.extract_strided_slice %12 {offsets = [4, 0], sizes = [2, 20], strides = [1, 1]} : vector<16x20xf32> to vector<2x20xf32>
    %cst_20 = arith.constant dense<0.000000e+00> : vector<2x20xf32>
    %73 = tpu.matmul %71, %13, %cst_20 {dimension_numbers = #tpu.dot_dimension_numbers<[1], [0], [0], [1], [0, 0, 1, 1], [], []>} : vector<2x5xf32>, vector<5x20xf32>, vector<2x20xf32> -> vector<2x20xf32>
    %74 = arith.addf %72, %73 : vector<2x20xf32>
    %75 = vector.extract_strided_slice %74 {offsets = [0, 0], sizes = [2, 5], strides = [1, 1]} : vector<2x20xf32> to vector<2x5xf32>
    %76 = arith.negf %75 : vector<2x5xf32>
    %77 = math.exp %76 : vector<2x5xf32>
    %cst_21 = arith.constant 1.000000e+00 : f32
    %78 = vector.broadcast %cst_21 : f32 to vector<2x5xf32>
    %79 = arith.addf %78, %77 : vector<2x5xf32>
    %80 = arith.divf %78, %79 : vector<2x5xf32>
    %81 = vector.extract_strided_slice %74 {offsets = [0, 5], sizes = [2, 5], strides = [1, 1]} : vector<2x20xf32> to vector<2x5xf32>
    %82 = arith.negf %81 : vector<2x5xf32>
    %83 = math.exp %82 : vector<2x5xf32>
    %cst_22 = arith.constant 1.000000e+00 : f32
    %84 = vector.broadcast %cst_22 : f32 to vector<2x5xf32>
    %85 = arith.addf %84, %83 : vector<2x5xf32>
    %86 = arith.divf %84, %85 : vector<2x5xf32>
    %87 = vector.extract_strided_slice %74 {offsets = [0, 10], sizes = [2, 5], strides = [1, 1]} : vector<2x20xf32> to vector<2x5xf32>
    %88 = math.tanh %87 : vector<2x5xf32>
    %89 = vector.extract_strided_slice %74 {offsets = [0, 15], sizes = [2, 5], strides = [1, 1]} : vector<2x20xf32> to vector<2x5xf32>
    %90 = arith.negf %89 : vector<2x5xf32>
    %91 = math.exp %90 : vector<2x5xf32>
    %cst_23 = arith.constant 1.000000e+00 : f32
    %92 = vector.broadcast %cst_23 : f32 to vector<2x5xf32>
    %93 = arith.addf %92, %91 : vector<2x5xf32>
    %94 = arith.divf %92, %93 : vector<2x5xf32>
    %95 = arith.mulf %86, %69 : vector<2x5xf32>
    %96 = arith.mulf %80, %88 : vector<2x5xf32>
    %97 = arith.addf %95, %96 : vector<2x5xf32>
    %98 = math.tanh %97 : vector<2x5xf32>
    %99 = arith.mulf %94, %98 : vector<2x5xf32>
    %100 = vector.extract_strided_slice %12 {offsets = [6, 0], sizes = [2, 20], strides = [1, 1]} : vector<16x20xf32> to vector<2x20xf32>
    %cst_24 = arith.constant dense<0.000000e+00> : vector<2x20xf32>
    %101 = tpu.matmul %99, %13, %cst_24 {dimension_numbers = #tpu.dot_dimension_numbers<[1], [0], [0], [1], [0, 0, 1, 1], [], []>} : vector<2x5xf32>, vector<5x20xf32>, vector<2x20xf32> -> vector<2x20xf32>
    %102 = arith.addf %100, %101 : vector<2x20xf32>
    %103 = vector.extract_strided_slice %102 {offsets = [0, 0], sizes = [2, 5], strides = [1, 1]} : vector<2x20xf32> to vector<2x5xf32>
    %104 = arith.negf %103 : vector<2x5xf32>
    %105 = math.exp %104 : vector<2x5xf32>
    %cst_25 = arith.constant 1.000000e+00 : f32
    %106 = vector.broadcast %cst_25 : f32 to vector<2x5xf32>
    %107 = arith.addf %106, %105 : vector<2x5xf32>
    %108 = arith.divf %106, %107 : vector<2x5xf32>
    %109 = vector.extract_strided_slice %102 {offsets = [0, 5], sizes = [2, 5], strides = [1, 1]} : vector<2x20xf32> to vector<2x5xf32>
    %110 = arith.negf %109 : vector<2x5xf32>
    %111 = math.exp %110 : vector<2x5xf32>
    %cst_26 = arith.constant 1.000000e+00 : f32
    %112 = vector.broadcast %cst_26 : f32 to vector<2x5xf32>
    %113 = arith.addf %112, %111 : vector<2x5xf32>
    %114 = arith.divf %112, %113 : vector<2x5xf32>
    %115 = vector.extract_strided_slice %102 {offsets = [0, 10], sizes = [2, 5], strides = [1, 1]} : vector<2x20xf32> to vector<2x5xf32>
    %116 = math.tanh %115 : vector<2x5xf32>
    %117 = vector.extract_strided_slice %102 {offsets = [0, 15], sizes = [2, 5], strides = [1, 1]} : vector<2x20xf32> to vector<2x5xf32>
    %118 = arith.negf %117 : vector<2x5xf32>
    %119 = math.exp %118 : vector<2x5xf32>
    %cst_27 = arith.constant 1.000000e+00 : f32
    %120 = vector.broadcast %cst_27 : f32 to vector<2x5xf32>
    %121 = arith.addf %120, %119 : vector<2x5xf32>
    %122 = arith.divf %120, %121 : vector<2x5xf32>
    %123 = arith.mulf %114, %97 : vector<2x5xf32>
    %124 = arith.mulf %108, %116 : vector<2x5xf32>
    %125 = arith.addf %123, %124 : vector<2x5xf32>
    %126 = math.tanh %125 : vector<2x5xf32>
    %127 = arith.mulf %122, %126 : vector<2x5xf32>
    %128 = vector.extract_strided_slice %12 {offsets = [8, 0], sizes = [2, 20], strides = [1, 1]} : vector<16x20xf32> to vector<2x20xf32>
    %cst_28 = arith.constant dense<0.000000e+00> : vector<2x20xf32>
    %129 = tpu.matmul %127, %13, %cst_28 {dimension_numbers = #tpu.dot_dimension_numbers<[1], [0], [0], [1], [0, 0, 1, 1], [], []>} : vector<2x5xf32>, vector<5x20xf32>, vector<2x20xf32> -> vector<2x20xf32>
    %130 = arith.addf %128, %129 : vector<2x20xf32>
    %131 = vector.extract_strided_slice %130 {offsets = [0, 0], sizes = [2, 5], strides = [1, 1]} : vector<2x20xf32> to vector<2x5xf32>
    %132 = arith.negf %131 : vector<2x5xf32>
    %133 = math.exp %132 : vector<2x5xf32>
    %cst_29 = arith.constant 1.000000e+00 : f32
    %134 = vector.broadcast %cst_29 : f32 to vector<2x5xf32>
    %135 = arith.addf %134, %133 : vector<2x5xf32>
    %136 = arith.divf %134, %135 : vector<2x5xf32>
    %137 = vector.extract_strided_slice %130 {offsets = [0, 5], sizes = [2, 5], strides = [1, 1]} : vector<2x20xf32> to vector<2x5xf32>
    %138 = arith.negf %137 : vector<2x5xf32>
    %139 = math.exp %138 : vector<2x5xf32>
    %cst_30 = arith.constant 1.000000e+00 : f32
    %140 = vector.broadcast %cst_30 : f32 to vector<2x5xf32>
    %141 = arith.addf %140, %139 : vector<2x5xf32>
    %142 = arith.divf %140, %141 : vector<2x5xf32>
    %143 = vector.extract_strided_slice %130 {offsets = [0, 10], sizes = [2, 5], strides = [1, 1]} : vector<2x20xf32> to vector<2x5xf32>
    %144 = math.tanh %143 : vector<2x5xf32>
    %145 = vector.extract_strided_slice %130 {offsets = [0, 15], sizes = [2, 5], strides = [1, 1]} : vector<2x20xf32> to vector<2x5xf32>
    %146 = arith.negf %145 : vector<2x5xf32>
    %147 = math.exp %146 : vector<2x5xf32>
    %cst_31 = arith.constant 1.000000e+00 : f32
    %148 = vector.broadcast %cst_31 : f32 to vector<2x5xf32>
    %149 = arith.addf %148, %147 : vector<2x5xf32>
    %150 = arith.divf %148, %149 : vector<2x5xf32>
    %151 = arith.mulf %142, %125 : vector<2x5xf32>
    %152 = arith.mulf %136, %144 : vector<2x5xf32>
    %153 = arith.addf %151, %152 : vector<2x5xf32>
    %154 = math.tanh %153 : vector<2x5xf32>
    %155 = arith.mulf %150, %154 : vector<2x5xf32>
    %156 = vector.extract_strided_slice %12 {offsets = [10, 0], sizes = [2, 20], strides = [1, 1]} : vector<16x20xf32> to vector<2x20xf32>
    %cst_32 = arith.constant dense<0.000000e+00> : vector<2x20xf32>
    %157 = tpu.matmul %155, %13, %cst_32 {dimension_numbers = #tpu.dot_dimension_numbers<[1], [0], [0], [1], [0, 0, 1, 1], [], []>} : vector<2x5xf32>, vector<5x20xf32>, vector<2x20xf32> -> vector<2x20xf32>
    %158 = arith.addf %156, %157 : vector<2x20xf32>
    %159 = vector.extract_strided_slice %158 {offsets = [0, 0], sizes = [2, 5], strides = [1, 1]} : vector<2x20xf32> to vector<2x5xf32>
    %160 = arith.negf %159 : vector<2x5xf32>
    %161 = math.exp %160 : vector<2x5xf32>
    %cst_33 = arith.constant 1.000000e+00 : f32
    %162 = vector.broadcast %cst_33 : f32 to vector<2x5xf32>
    %163 = arith.addf %162, %161 : vector<2x5xf32>
    %164 = arith.divf %162, %163 : vector<2x5xf32>
    %165 = vector.extract_strided_slice %158 {offsets = [0, 5], sizes = [2, 5], strides = [1, 1]} : vector<2x20xf32> to vector<2x5xf32>
    %166 = arith.negf %165 : vector<2x5xf32>
    %167 = math.exp %166 : vector<2x5xf32>
    %cst_34 = arith.constant 1.000000e+00 : f32
    %168 = vector.broadcast %cst_34 : f32 to vector<2x5xf32>
    %169 = arith.addf %168, %167 : vector<2x5xf32>
    %170 = arith.divf %168, %169 : vector<2x5xf32>
    %171 = vector.extract_strided_slice %158 {offsets = [0, 10], sizes = [2, 5], strides = [1, 1]} : vector<2x20xf32> to vector<2x5xf32>
    %172 = math.tanh %171 : vector<2x5xf32>
    %173 = vector.extract_strided_slice %158 {offsets = [0, 15], sizes = [2, 5], strides = [1, 1]} : vector<2x20xf32> to vector<2x5xf32>
    %174 = arith.negf %173 : vector<2x5xf32>
    %175 = math.exp %174 : vector<2x5xf32>
    %cst_35 = arith.constant 1.000000e+00 : f32
    %176 = vector.broadcast %cst_35 : f32 to vector<2x5xf32>
    %177 = arith.addf %176, %175 : vector<2x5xf32>
    %178 = arith.divf %176, %177 : vector<2x5xf32>
    %179 = arith.mulf %170, %153 : vector<2x5xf32>
    %180 = arith.mulf %164, %172 : vector<2x5xf32>
    %181 = arith.addf %179, %180 : vector<2x5xf32>
    %182 = math.tanh %181 : vector<2x5xf32>
    %183 = arith.mulf %178, %182 : vector<2x5xf32>
    %184 = vector.extract_strided_slice %12 {offsets = [12, 0], sizes = [2, 20], strides = [1, 1]} : vector<16x20xf32> to vector<2x20xf32>
    %cst_36 = arith.constant dense<0.000000e+00> : vector<2x20xf32>
    %185 = tpu.matmul %183, %13, %cst_36 {dimension_numbers = #tpu.dot_dimension_numbers<[1], [0], [0], [1], [0, 0, 1, 1], [], []>} : vector<2x5xf32>, vector<5x20xf32>, vector<2x20xf32> -> vector<2x20xf32>
    %186 = arith.addf %184, %185 : vector<2x20xf32>
    %187 = vector.extract_strided_slice %186 {offsets = [0, 0], sizes = [2, 5], strides = [1, 1]} : vector<2x20xf32> to vector<2x5xf32>
    %188 = arith.negf %187 : vector<2x5xf32>
    %189 = math.exp %188 : vector<2x5xf32>
    %cst_37 = arith.constant 1.000000e+00 : f32
    %190 = vector.broadcast %cst_37 : f32 to vector<2x5xf32>
    %191 = arith.addf %190, %189 : vector<2x5xf32>
    %192 = arith.divf %190, %191 : vector<2x5xf32>
    %193 = vector.extract_strided_slice %186 {offsets = [0, 5], sizes = [2, 5], strides = [1, 1]} : vector<2x20xf32> to vector<2x5xf32>
    %194 = arith.negf %193 : vector<2x5xf32>
    %195 = math.exp %194 : vector<2x5xf32>
    %cst_38 = arith.constant 1.000000e+00 : f32
    %196 = vector.broadcast %cst_38 : f32 to vector<2x5xf32>
    %197 = arith.addf %196, %195 : vector<2x5xf32>
    %198 = arith.divf %196, %197 : vector<2x5xf32>
    %199 = vector.extract_strided_slice %186 {offsets = [0, 10], sizes = [2, 5], strides = [1, 1]} : vector<2x20xf32> to vector<2x5xf32>
    %200 = math.tanh %199 : vector<2x5xf32>
    %201 = vector.extract_strided_slice %186 {offsets = [0, 15], sizes = [2, 5], strides = [1, 1]} : vector<2x20xf32> to vector<2x5xf32>
    %202 = arith.negf %201 : vector<2x5xf32>
    %203 = math.exp %202 : vector<2x5xf32>
    %cst_39 = arith.constant 1.000000e+00 : f32
    %204 = vector.broadcast %cst_39 : f32 to vector<2x5xf32>
    %205 = arith.addf %204, %203 : vector<2x5xf32>
    %206 = arith.divf %204, %205 : vector<2x5xf32>
    %207 = arith.mulf %198, %181 : vector<2x5xf32>
    %208 = arith.mulf %192, %200 : vector<2x5xf32>
    %209 = arith.addf %207, %208 : vector<2x5xf32>
    %210 = math.tanh %209 : vector<2x5xf32>
    %211 = arith.mulf %206, %210 : vector<2x5xf32>
    %212 = vector.extract_strided_slice %12 {offsets = [14, 0], sizes = [2, 20], strides = [1, 1]} : vector<16x20xf32> to vector<2x20xf32>
    %cst_40 = arith.constant dense<0.000000e+00> : vector<2x20xf32>
    %213 = tpu.matmul %211, %13, %cst_40 {dimension_numbers = #tpu.dot_dimension_numbers<[1], [0], [0], [1], [0, 0, 1, 1], [], []>} : vector<2x5xf32>, vector<5x20xf32>, vector<2x20xf32> -> vector<2x20xf32>
    %214 = arith.addf %212, %213 : vector<2x20xf32>
    %215 = vector.extract_strided_slice %214 {offsets = [0, 0], sizes = [2, 5], strides = [1, 1]} : vector<2x20xf32> to vector<2x5xf32>
    %216 = arith.negf %215 : vector<2x5xf32>
    %217 = math.exp %216 : vector<2x5xf32>
    %cst_41 = arith.constant 1.000000e+00 : f32
    %218 = vector.broadcast %cst_41 : f32 to vector<2x5xf32>
    %219 = arith.addf %218, %217 : vector<2x5xf32>
    %220 = arith.divf %218, %219 : vector<2x5xf32>
    %221 = vector.extract_strided_slice %214 {offsets = [0, 5], sizes = [2, 5], strides = [1, 1]} : vector<2x20xf32> to vector<2x5xf32>
    %222 = arith.negf %221 : vector<2x5xf32>
    %223 = math.exp %222 : vector<2x5xf32>
    %cst_42 = arith.constant 1.000000e+00 : f32
    %224 = vector.broadcast %cst_42 : f32 to vector<2x5xf32>
    %225 = arith.addf %224, %223 : vector<2x5xf32>
    %226 = arith.divf %224, %225 : vector<2x5xf32>
    %227 = vector.extract_strided_slice %214 {offsets = [0, 10], sizes = [2, 5], strides = [1, 1]} : vector<2x20xf32> to vector<2x5xf32>
    %228 = math.tanh %227 : vector<2x5xf32>
    %229 = vector.extract_strided_slice %214 {offsets = [0, 15], sizes = [2, 5], strides = [1, 1]} : vector<2x20xf32> to vector<2x5xf32>
    %230 = arith.negf %229 : vector<2x5xf32>
    %231 = math.exp %230 : vector<2x5xf32>
    %cst_43 = arith.constant 1.000000e+00 : f32
    %232 = vector.broadcast %cst_43 : f32 to vector<2x5xf32>
    %233 = arith.addf %232, %231 : vector<2x5xf32>
    %234 = arith.divf %232, %233 : vector<2x5xf32>
    %235 = arith.mulf %226, %209 : vector<2x5xf32>
    %236 = arith.mulf %220, %228 : vector<2x5xf32>
    %237 = arith.addf %235, %236 : vector<2x5xf32>
    %238 = math.tanh %237 : vector<2x5xf32>
    %239 = arith.mulf %234, %238 : vector<2x5xf32>
    %c0_44 = arith.constant 0 : index
    %c0_45 = arith.constant 0 : index
    %240 = vector.load %arg5[%c0_44, %c0_45] : memref<5x2xf32, #tpu.memory_space<vmem>>, vector<5x2xf32>
    %cst_46 = arith.constant dense<0.000000e+00> : vector<2x2xf32>
    %241 = tpu.matmul %239, %240, %cst_46 {dimension_numbers = #tpu.dot_dimension_numbers<[1], [0], [0], [1], [0, 0, 1, 1], [], []>} : vector<2x5xf32>, vector<5x2xf32>, vector<2x2xf32> -> vector<2x2xf32>
    %c0_47 = arith.constant 0 : index
    %c0_48 = arith.constant 0 : index
    %242 = vector.load %arg6[%c0_47, %c0_48] : memref<1x2xf32, #tpu.memory_space<vmem>>, vector<1x2xf32>
    %243 = vector.broadcast %242 : vector<1x2xf32> to vector<2x2xf32>
    %244 = arith.addf %241, %243 : vector<2x2xf32>
    %c0_49 = arith.constant 0 : index
    %c0_50 = arith.constant 0 : index
    %245 = vector.load %arg7[%c0_49, %c0_50] : memref<2x2xf32, #tpu.memory_space<vmem>>, vector<2x2xf32>
    tpu.vector_store %arg7[%c0_49, %c0_50], %244 {strides = array<i32>} : memref<2x2xf32, #tpu.memory_space<vmem>>, vector<2x2xf32>,
    return
  }
}

</mosaic_0001>

<llo_original>
// kernel: tpu_custom_call.1
$region0: #{tpu_custom_call.1}
  #allocation0 [shape = 'u32[]', space=smem, size = 0x4, offset = 0x4, fixed_abs, tag = 'smem constant byte address 0x4 - core index']
  #allocation1 [shape = 'u32[72,128]{1,0:T(1,128)}', space=vmem, size = 0x9000, scoped, tag = 'internal scratch']
  %s0 = inlined_call_operand.vmem [shape: s32[16,1], index: 0, kind: input, shape index: {}]
  %s1 = inlined_call_operand.vmem [shape: f32[11,5], index: 1, kind: input, shape index: {}]
  %s2 = inlined_call_operand.vmem [shape: f32[5,20], index: 2, kind: input, shape index: {}]
  %s3 = inlined_call_operand.vmem [shape: f32[5,20], index: 3, kind: input, shape index: {}]
  %s4 = inlined_call_operand.vmem [shape: f32[1,20], index: 4, kind: input, shape index: {}]
  %s5 = inlined_call_operand.vmem [shape: f32[5,2], index: 5, kind: input, shape index: {}]
  %s6 = inlined_call_operand.vmem [shape: f32[1,2], index: 6, kind: input, shape index: {}]
  %s7 = inlined_call_operand.hbm [shape: f32[2,2], index: 7, kind: output, shape index: {}]
  %s8 = sld [smem:[#allocation0]]
  $region38: #{tpu_custom_call.1} parent=0
    _
  %s10 = ssub.s32 1, %s8
  %s11 = scalar_select 0, %s10, %s8
  $region1: #{tpu_custom_call.1} parent=0
    #allocation2 [shape = 'u8[1024]{0}', space=vmem, size = 0x400, scoped, tag = 'output window, operand 0, single buffered']
    #allocation3 [shape = 's32[1]{0}', space=sflag, size = 0x4, scoped, tag = 'scoped memory for tpu_custom_call.1']
    %12 = vsyncpa [#allocation3], 0
    // Predicated region
    $region2: #{tpu_custom_call.1} parent=1 // pred_check
      _
    $region3: #{tpu_custom_call.1} parent=1 // pred_check_branch
      %14 = sbr.rel (0) target = $region5
    $region4: #{tpu_custom_call.1} parent=1 // pred_region
      _
    $region5: #{tpu_custom_call.1} parent=1 // pred_fallthru
      _
    // Predicated region
    $region6: #{tpu_custom_call.1} parent=1 // pred_check
      _
    $region7: #{tpu_custom_call.1} parent=1 // pred_check_branch
      %16 = sbr.rel (0) target = $region9
    $region8: #{tpu_custom_call.1} parent=1 // pred_region
      _
    $region9: #{tpu_custom_call.1} parent=1 // pred_fallthru
      _
    // Predicated region
    $region10: #{tpu_custom_call.1} parent=1 // pred_check
      _
    $region11: #{tpu_custom_call.1} parent=1 // pred_check_branch
      %18 = sbr.rel (0) target = $region13
    $region12: #{tpu_custom_call.1} parent=1 // pred_region
      _
    $region13: #{tpu_custom_call.1} parent=1 // pred_fallthru
      _
    // Predicated region
    $region14: #{tpu_custom_call.1} parent=1 // pred_check
      _
    $region15: #{tpu_custom_call.1} parent=1 // pred_check_branch
      %20 = sbr.rel (0) target = $region17
    $region16: #{tpu_custom_call.1} parent=1 // pred_region
      _
    $region17: #{tpu_custom_call.1} parent=1 // pred_fallthru
      _
    // Predicated region
    $region18: #{tpu_custom_call.1} parent=1 // pred_check
      _
    $region19: #{tpu_custom_call.1} parent=1 // pred_check_branch
      %22 = sbr.rel (0) target = $region21
    $region20: #{tpu_custom_call.1} parent=1 // pred_region
      _
    $region21: #{tpu_custom_call.1} parent=1 // pred_fallthru
      _
    // Predicated region
    $region22: #{tpu_custom_call.1} parent=1 // pred_check
      _
    $region23: #{tpu_custom_call.1} parent=1 // pred_check_branch
      %24 = sbr.rel (0) target = $region25
    $region24: #{tpu_custom_call.1} parent=1 // pred_region
      _
    $region25: #{tpu_custom_call.1} parent=1 // pred_fallthru
      _
    // Predicated region
    $region26: #{tpu_custom_call.1} parent=1 // pred_check
      _
    $region27: #{tpu_custom_call.1} parent=1 // pred_check_branch
      %26 = sbr.rel (0) target = $region29
    $region28: #{tpu_custom_call.1} parent=1 // pred_region
      _
    $region29: #{tpu_custom_call.1} parent=1 // pred_fallthru
      _
    %v27 = vld [vmem:[%s0] sm:$0xff]
    %v28 = vld [vmem:[%s0 + $0x8] sm:$0xff]
    %v29 = vlaneseq
    %v30 = vand.u32 %v29, 127
    %31 = vset.pattern.permute.xlu0 0
    %32 = vperm.xlu0 %31, %v27
    %v33 = vpop.permute.xlu0 %32
    %34 = vset.pattern.permute.xlu0 0
    %35 = vperm.xlu0 %34, %v28
    %v36 = vpop.permute.xlu0 %35
    %vm37 = vcmp.eq.s32.totalorder %v30, %v33
    %vm38 = vcmp.eq.s32.totalorder %v30, %v36
    %v39 = vsel %vm37, 1, 0
    %v40 = vsel %vm38, 1, 0
    %v41 = vcvt.s32.f32 %v39
    %v42 = vcvt.s32.f32 %v40
    %v43 = vld [vmem:[%s1] sm:$0xff]
    %v44 = vld [vmem:[%s1 + $0x8] sm:$0x7]
    %vm45 = vcmask 89088
    %v47 = vsel %vm45, %v41, 0
    %v50 = vsel %vm45, %v42, 0
    %vm52 = vcmask 1042432
    %v54 = vsel %vm52, %v44, 0
    %56 = vmatpush.msra.mxu0 0.0
    %57 = vmatpush.msra.mxu0 0.0
    %58 = vmatpush.msra.mxu0 0.0
    %59 = vmatpush.msra.mxu0 0.0
    %60 = vmatpush.msra.mxu0 0.0
    %61 = vmatpush.msra.mxu0 0.0
    %62 = vmatpush.msra.mxu0 0.0
    %63 = vmatpush.msra.mxu0 0.0
    %64 = vmatpush.msra.mxu0 0.0
    %65 = vmatpush.msra.mxu0 0.0
    %66 = vmatpush.msra.mxu0 0.0
    %67 = vmatpush.msra.mxu0 0.0
    %68 = vmatpush.msra.mxu0 0.0
    %69 = vmatpush.msra.mxu0 0.0
    %70 = vmatpush.msra.mxu0 %v54
    %71 = vmatpush.msra.mxu0 %v43
    %72 = vmatmul.f32.gmra.mxu0 %v47
    %v73 = vpop.f32.mrf.mxu0
    %v74 = vadd.f32 0.0, %v73
    %75 = vmatmul.f32.gmra.mxu0 %v50
    %v76 = vpop.f32.mrf.mxu0
    %v77 = vadd.f32 0.0, %v76
    %78 = vdwg.mxu0
    %v79 = vld [vmem:[%s2] sm:$0x1f]
    %v80 = vld [vmem:[%s4] sm:$0x1]
    %v82 = vperm.slane %v80, 0
    %vm84 = vcmask 39936
    %v86 = vsel %vm84, %v74, 0
    %v89 = vsel %vm84, %v77, 0
    %vm91 = vcmask 1044480
    %v93 = vsel %vm91, %v79, 0
    %95 = vmatpush.msra.mxu0 0.0
    %96 = vmatpush.msra.mxu0 0.0
    %97 = vmatpush.msra.mxu0 0.0
    %98 = vmatpush.msra.mxu0 0.0
    %99 = vmatpush.msra.mxu0 0.0
    %100 = vmatpush.msra.mxu0 0.0
    %101 = vmatpush.msra.mxu0 0.0
    %102 = vmatpush.msra.mxu0 0.0
    %103 = vmatpush.msra.mxu0 0.0
    %104 = vmatpush.msra.mxu0 0.0
    %105 = vmatpush.msra.mxu0 0.0
    %106 = vmatpush.msra.mxu0 0.0
    %107 = vmatpush.msra.mxu0 0.0
    %108 = vmatpush.msra.mxu0 0.0
    %109 = vmatpush.msra.mxu0 0.0
    %110 = vmatpush.msra.mxu0 %v93
    %111 = vmatmul.f32.gmra.mxu0 %v86
    %v112 = vpop.f32.mrf.mxu0
    %v113 = vadd.f32 %v82, %v112
    %114 = vmatmul.f32.gmra.mxu0 %v89
    %v115 = vpop.f32.mrf.mxu0
    %v116 = vadd.f32 %v82, %v115
    %117 = vdwg.mxu0
    %v118 = vld [vmem:[%s3] sm:$0x1f]
    %v120 = vsel %vm84, 0.0, 0
    %v123 = vsel %vm91, %v118, 0
    %125 = vmatpush.msra.mxu0 0.0
    %126 = vmatpush.msra.mxu0 0.0
    %127 = vmatpush.msra.mxu0 0.0
    %128 = vmatpush.msra.mxu0 0.0
    %129 = vmatpush.msra.mxu0 0.0
    %130 = vmatpush.msra.mxu0 0.0
    %131 = vmatpush.msra.mxu0 0.0
    %132 = vmatpush.msra.mxu0 0.0
    %133 = vmatpush.msra.mxu0 0.0
    %134 = vmatpush.msra.mxu0 0.0
    %135 = vmatpush.msra.mxu0 0.0
    %136 = vmatpush.msra.mxu0 0.0
    %137 = vmatpush.msra.mxu0 0.0
    %138 = vmatpush.msra.mxu0 0.0
    %139 = vmatpush.msra.mxu0 0.0
    %140 = vmatpush.msra.mxu0 %v123
    %141 = vmatmul.f32.gmra.mxu0 %v120
    %v142 = vpop.f32.mrf.mxu0
    %v143 = vadd.f32 0.0, %v142
    %144 = vdwg.mxu0
    %v145 = vadd.f32 %v113, %v143
    %v146 = vxor.u32 %v145, 2147483648
    %v147 = vmul.f32 %v146, 1.442695
    %v148 = vpow.pop %v147
    %v149 = vadd.f32 %v148, 1.0
    %v150 = vrcp.pop %v149
    %v151 = vmul.f32 %v149, %v150
    %v152 = vsub.f32 1.0, %v151
    %v153 = vmul.f32 %v150, %v152
    %v154 = vadd.f32 %v150, %v153
    %vm155 = vweird.f32 %v149
    %vm156 = vweird.f32 %v150
    %vm157 = vmor %vm155, %vm156
    %v158 = vsel %vm157, %v150, %v154
    %v159 = vand.u32 2147483647, %v149
    %vm160 = vcmp.eq.f32.partialorder %v159, 8.507059e+37
    %v161 = vand.u32 %v149, 2147483648
    %v162 = vor.u32 1.1754944e-38, %v161
    %v163 = vsel %vm160, %v162, %v158
    %v164 = vmul.f32 1.0, %v163
    %v165 = vtanh.pop %v145
    %v166 = vmul.f32 %v164, 0.0
    %168 = vrot.lane.b32.xlu0 %v165, 118
    %v169 = vpop.permute.xlu0 %168
    %v171 = vmul.f32 %v164, %v169
    %173 = vrot.lane.b32.xlu0 %v171, 5
    %v174 = vpop.permute.xlu0 %173
    %v176 = vadd.f32 %v166, %v174
    %v177 = vtanh.pop %v176
    %179 = vrot.lane.b32.xlu0 %v177, 10
    %v180 = vpop.permute.xlu0 %179
    %v182 = vmul.f32 %v164, %v180
    %184 = vrot.lane.b32.xlu0 %v182, 113
    %v185 = vpop.permute.xlu0 %184
    %v186 = vsel %vm84, %v185, 0
    %188 = vmatpush.msra.mxu0 0.0
    %189 = vmatpush.msra.mxu0 0.0
    %190 = vmatpush.msra.mxu0 0.0
    %191 = vmatpush.msra.mxu0 0.0
    %192 = vmatpush.msra.mxu0 0.0
    %193 = vmatpush.msra.mxu0 0.0
    %194 = vmatpush.msra.mxu0 0.0
    %195 = vmatpush.msra.mxu0 0.0
    %196 = vmatpush.msra.mxu0 0.0
    %197 = vmatpush.msra.mxu0 0.0
    %198 = vmatpush.msra.mxu0 0.0
    %199 = vmatpush.msra.mxu0 0.0
    %200 = vmatpush.msra.mxu0 0.0
    %201 = vmatpush.msra.mxu0 0.0
    %202 = vmatpush.msra.mxu0 0.0
    %203 = vmatpush.msra.mxu0 %v123
    %204 = vmatmul.f32.gmra.mxu0 %v186
    %v205 = vpop.f32.mrf.mxu0
    %v206 = vadd.f32 0.0, %v205
    %207 = vdwg.mxu0
    %v209 = vrot.slane %v206, 6
    %v211 = vadd.f32 %v113, %v209
    %v212 = vxor.u32 %v211, 2147483648
    %v213 = vmul.f32 %v212, 1.442695
    %v214 = vpow.pop %v213
    %v215 = vadd.f32 %v214, 1.0
    %v216 = vrcp.pop %v215
    %v217 = vmul.f32 %v215, %v216
    %v218 = vsub.f32 1.0, %v217
    %v219 = vmul.f32 %v216, %v218
    %v220 = vadd.f32 %v216, %v219
    %vm221 = vweird.f32 %v215
    %vm222 = vweird.f32 %v216
    %vm223 = vmor %vm221, %vm222
    %v224 = vsel %vm223, %v216, %v220
    %v225 = vand.u32 2147483647, %v215
    %vm226 = vcmp.eq.f32.partialorder %v225, 8.507059e+37
    %v227 = vand.u32 %v215, 2147483648
    %v228 = vor.u32 1.1754944e-38, %v227
    %v229 = vsel %vm226, %v228, %v224
    %v230 = vmul.f32 1.0, %v229
    %v231 = vtanh.pop %v211
    %v233 = vrot.slane %v176, 6
    %v235 = vmul.f32 %v230, %v233
    %237 = vrot.lane.b32.xlu0 %v231, 118
    %v238 = vpop.permute.xlu0 %237
    %v240 = vmul.f32 %v230, %v238
    %242 = vrot.lane.b32.xlu0 %v240, 5
    %v243 = vpop.permute.xlu0 %242
    %v245 = vadd.f32 %v235, %v243
    %v246 = vtanh.pop %v245
    %248 = vrot.lane.b32.xlu0 %v246, 10
    %v249 = vpop.permute.xlu0 %248
    %v251 = vmul.f32 %v230, %v249
    %v253 = vrot.slane %v251, 2
    %254 = vrot.lane.b32.xlu0 %v253, 113
    %v255 = vpop.permute.xlu0 %254
    %v256 = vsel %vm84, %v255, 0
    %258 = vmatpush.msra.mxu0 0.0
    %259 = vmatpush.msra.mxu0 0.0
    %260 = vmatpush.msra.mxu0 0.0
    %261 = vmatpush.msra.mxu0 0.0
    %262 = vmatpush.msra.mxu0 0.0
    %263 = vmatpush.msra.mxu0 0.0
    %264 = vmatpush.msra.mxu0 0.0
    %265 = vmatpush.msra.mxu0 0.0
    %266 = vmatpush.msra.mxu0 0.0
    %267 = vmatpush.msra.mxu0 0.0
    %268 = vmatpush.msra.mxu0 0.0
    %269 = vmatpush.msra.mxu0 0.0
    %270 = vmatpush.msra.mxu0 0.0
    %271 = vmatpush.msra.mxu0 0.0
    %272 = vmatpush.msra.mxu0 0.0
    %273 = vmatpush.msra.mxu0 %v123
    %274 = vmatmul.f32.gmra.mxu0 %v256
    %v275 = vpop.f32.mrf.mxu0
    %v276 = vadd.f32 0.0, %v275
    %277 = vdwg.mxu0
    %v279 = vrot.slane %v276, 4
    %v281 = vadd.f32 %v113, %v279
    %v282 = vxor.u32 %v281, 2147483648
    %v283 = vmul.f32 %v282, 1.442695
    %v284 = vpow.pop %v283
    %v285 = vadd.f32 %v284, 1.0
    %v286 = vrcp.pop %v285
    %v287 = vmul.f32 %v285, %v286
    %v288 = vsub.f32 1.0, %v287
    %v289 = vmul.f32 %v286, %v288
    %v290 = vadd.f32 %v286, %v289
    %vm291 = vweird.f32 %v285
    %vm292 = vweird.f32 %v286
    %vm293 = vmor %vm291, %vm292
    %v294 = vsel %vm293, %v286, %v290
    %v295 = vand.u32 2147483647, %v285
    %vm296 = vcmp.eq.f32.partialorder %v295, 8.507059e+37
    %v297 = vand.u32 %v285, 2147483648
    %v298 = vor.u32 1.1754944e-38, %v297
    %v299 = vsel %vm296, %v298, %v294
    %v300 = vmul.f32 1.0, %v299
    %v301 = vtanh.pop %v281
    %v303 = vrot.slane %v245, 6
    %v305 = vmul.f32 %v300, %v303
    %307 = vrot.lane.b32.xlu0 %v301, 118
    %v308 = vpop.permute.xlu0 %307
    %v310 = vmul.f32 %v300, %v308
    %312 = vrot.lane.b32.xlu0 %v310, 5
    %v313 = vpop.permute.xlu0 %312
    %v315 = vadd.f32 %v305, %v313
    %v316 = vtanh.pop %v315
    %318 = vrot.lane.b32.xlu0 %v316, 10
    %v319 = vpop.permute.xlu0 %318
    %v321 = vmul.f32 %v300, %v319
    %v323 = vrot.slane %v321, 4
    %324 = vrot.lane.b32.xlu0 %v323, 113
    %v325 = vpop.permute.xlu0 %324
    %v326 = vsel %vm84, %v325, 0
    %328 = vmatpush.msra.mxu0 0.0
    %329 = vmatpush.msra.mxu0 0.0
    %330 = vmatpush.msra.mxu0 0.0
    %331 = vmatpush.msra.mxu0 0.0
    %332 = vmatpush.msra.mxu0 0.0
    %333 = vmatpush.msra.mxu0 0.0
    %334 = vmatpush.msra.mxu0 0.0
    %335 = vmatpush.msra.mxu0 0.0
    %336 = vmatpush.msra.mxu0 0.0
    %337 = vmatpush.msra.mxu0 0.0
    %338 = vmatpush.msra.mxu0 0.0
    %339 = vmatpush.msra.mxu0 0.0
    %340 = vmatpush.msra.mxu0 0.0
    %341 = vmatpush.msra.mxu0 0.0
    %342 = vmatpush.msra.mxu0 0.0
    %343 = vmatpush.msra.mxu0 %v123
    %344 = vmatmul.f32.gmra.mxu0 %v326
    %v345 = vpop.f32.mrf.mxu0
    %v346 = vadd.f32 0.0, %v345
    %347 = vdwg.mxu0
    %v349 = vrot.slane %v346, 2
    %v351 = vadd.f32 %v113, %v349
    %v352 = vxor.u32 %v351, 2147483648
    %v353 = vmul.f32 %v352, 1.442695
    %v354 = vpow.pop %v353
    %v355 = vadd.f32 %v354, 1.0
    %v356 = vrcp.pop %v355
    %v357 = vmul.f32 %v355, %v356
    %v358 = vsub.f32 1.0, %v357
    %v359 = vmul.f32 %v356, %v358
    %v360 = vadd.f32 %v356, %v359
    %vm361 = vweird.f32 %v355
    %vm362 = vweird.f32 %v356
    %vm363 = vmor %vm361, %vm362
    %v364 = vsel %vm363, %v356, %v360
    %v365 = vand.u32 2147483647, %v355
    %vm366 = vcmp.eq.f32.partialorder %v365, 8.507059e+37
    %v367 = vand.u32 %v355, 2147483648
    %v368 = vor.u32 1.1754944e-38, %v367
    %v369 = vsel %vm366, %v368, %v364
    %v370 = vmul.f32 1.0, %v369
    %v371 = vtanh.pop %v351
    %v373 = vrot.slane %v315, 6
    %v375 = vmul.f32 %v370, %v373
    %377 = vrot.lane.b32.xlu0 %v371, 118
    %v378 = vpop.permute.xlu0 %377
    %v380 = vmul.f32 %v370, %v378
    %382 = vrot.lane.b32.xlu0 %v380, 5
    %v383 = vpop.permute.xlu0 %382
    %v385 = vadd.f32 %v375, %v383
    %v386 = vtanh.pop %v385
    %388 = vrot.lane.b32.xlu0 %v386, 10
    %v389 = vpop.permute.xlu0 %388
    %v391 = vmul.f32 %v370, %v389
    %v393 = vrot.slane %v391, 6
    %394 = vrot.lane.b32.xlu0 %v393, 113
    %v395 = vpop.permute.xlu0 %394
    %v396 = vsel %vm84, %v395, 0
    %398 = vmatpush.msra.mxu0 0.0
    %399 = vmatpush.msra.mxu0 0.0
    %400 = vmatpush.msra.mxu0 0.0
    %401 = vmatpush.msra.mxu0 0.0
    %402 = vmatpush.msra.mxu0 0.0
    %403 = vmatpush.msra.mxu0 0.0
    %404 = vmatpush.msra.mxu0 0.0
    %405 = vmatpush.msra.mxu0 0.0
    %406 = vmatpush.msra.mxu0 0.0
    %407 = vmatpush.msra.mxu0 0.0
    %408 = vmatpush.msra.mxu0 0.0
    %409 = vmatpush.msra.mxu0 0.0
    %410 = vmatpush.msra.mxu0 0.0
    %411 = vmatpush.msra.mxu0 0.0
    %412 = vmatpush.msra.mxu0 0.0
    %413 = vmatpush.msra.mxu0 %v123
    %414 = vmatmul.f32.gmra.mxu0 %v396
    %v415 = vpop.f32.mrf.mxu0
    %v416 = vadd.f32 0.0, %v415
    %417 = vdwg.mxu0
    %v418 = vadd.f32 %v116, %v416
    %v419 = vxor.u32 %v418, 2147483648
    %v420 = vmul.f32 %v419, 1.442695
    %v421 = vpow.pop %v420
    %v422 = vadd.f32 %v421, 1.0
    %v423 = vrcp.pop %v422
    %v424 = vmul.f32 %v422, %v423
    %v425 = vsub.f32 1.0, %v424
    %v426 = vmul.f32 %v423, %v425
    %v427 = vadd.f32 %v423, %v426
    %vm428 = vweird.f32 %v422
    %vm429 = vweird.f32 %v423
    %vm430 = vmor %vm428, %vm429
    %v431 = vsel %vm430, %v423, %v427
    %v432 = vand.u32 2147483647, %v422
    %vm433 = vcmp.eq.f32.partialorder %v432, 8.507059e+37
    %v434 = vand.u32 %v422, 2147483648
    %v435 = vor.u32 1.1754944e-38, %v434
    %v436 = vsel %vm433, %v435, %v431
    %v437 = vmul.f32 1.0, %v436
    %v438 = vtanh.pop %v418
    %v440 = vrot.slane %v385, 6
    %v442 = vmul.f32 %v437, %v440
    %444 = vrot.lane.b32.xlu0 %v438, 118
    %v445 = vpop.permute.xlu0 %444
    %v447 = vmul.f32 %v437, %v445
    %449 = vrot.lane.b32.xlu0 %v447, 5
    %v450 = vpop.permute.xlu0 %449
    %v452 = vadd.f32 %v442, %v450
    %v453 = vtanh.pop %v452
    %455 = vrot.lane.b32.xlu0 %v453, 10
    %v456 = vpop.permute.xlu0 %455
    %v458 = vmul.f32 %v437, %v456
    %460 = vrot.lane.b32.xlu0 %v458, 113
    %v461 = vpop.permute.xlu0 %460
    %v462 = vsel %vm84, %v461, 0
    %464 = vmatpush.msra.mxu0 0.0
    %465 = vmatpush.msra.mxu0 0.0
    %466 = vmatpush.msra.mxu0 0.0
    %467 = vmatpush.msra.mxu0 0.0
    %468 = vmatpush.msra.mxu0 0.0
    %469 = vmatpush.msra.mxu0 0.0
    %470 = vmatpush.msra.mxu0 0.0
    %471 = vmatpush.msra.mxu0 0.0
    %472 = vmatpush.msra.mxu0 0.0
    %473 = vmatpush.msra.mxu0 0.0
    %474 = vmatpush.msra.mxu0 0.0
    %475 = vmatpush.msra.mxu0 0.0
    %476 = vmatpush.msra.mxu0 0.0
    %477 = vmatpush.msra.mxu0 0.0
    %478 = vmatpush.msra.mxu0 0.0
    %479 = vmatpush.msra.mxu0 %v123
    %480 = vmatmul.f32.gmra.mxu0 %v462
    %v481 = vpop.f32.mrf.mxu0
    %v482 = vadd.f32 0.0, %v481
    %483 = vdwg.mxu0
    %v485 = vrot.slane %v482, 6
    %v487 = vadd.f32 %v116, %v485
    %v488 = vxor.u32 %v487, 2147483648
    %v489 = vmul.f32 %v488, 1.442695
    %v490 = vpow.pop %v489
    %v491 = vadd.f32 %v490, 1.0
    %v492 = vrcp.pop %v491
    %v493 = vmul.f32 %v491, %v492
    %v494 = vsub.f32 1.0, %v493
    %v495 = vmul.f32 %v492, %v494
    %v496 = vadd.f32 %v492, %v495
    %vm497 = vweird.f32 %v491
    %vm498 = vweird.f32 %v492
    %vm499 = vmor %vm497, %vm498
    %v500 = vsel %vm499, %v492, %v496
    %v501 = vand.u32 2147483647, %v491
    %vm502 = vcmp.eq.f32.partialorder %v501, 8.507059e+37
    %v503 = vand.u32 %v491, 2147483648
    %v504 = vor.u32 1.1754944e-38, %v503
    %v505 = vsel %vm502, %v504, %v500
    %v506 = vmul.f32 1.0, %v505
    %v507 = vtanh.pop %v487
    %v509 = vrot.slane %v452, 6
    %v511 = vmul.f32 %v506, %v509
    %513 = vrot.lane.b32.xlu0 %v507, 118
    %v514 = vpop.permute.xlu0 %513
    %v516 = vmul.f32 %v506, %v514
    %518 = vrot.lane.b32.xlu0 %v516, 5
    %v519 = vpop.permute.xlu0 %518
    %v521 = vadd.f32 %v511, %v519
    %v522 = vtanh.pop %v521
    %524 = vrot.lane.b32.xlu0 %v522, 10
    %v525 = vpop.permute.xlu0 %524
    %v527 = vmul.f32 %v506, %v525
    %v529 = vrot.slane %v527, 2
    %530 = vrot.lane.b32.xlu0 %v529, 113
    %v531 = vpop.permute.xlu0 %530
    %v532 = vsel %vm84, %v531, 0
    %534 = vmatpush.msra.mxu0 0.0
    %535 = vmatpush.msra.mxu0 0.0
    %536 = vmatpush.msra.mxu0 0.0
    %537 = vmatpush.msra.mxu0 0.0
    %538 = vmatpush.msra.mxu0 0.0
    %539 = vmatpush.msra.mxu0 0.0
    %540 = vmatpush.msra.mxu0 0.0
    %541 = vmatpush.msra.mxu0 0.0
    %542 = vmatpush.msra.mxu0 0.0
    %543 = vmatpush.msra.mxu0 0.0
    %544 = vmatpush.msra.mxu0 0.0
    %545 = vmatpush.msra.mxu0 0.0
    %546 = vmatpush.msra.mxu0 0.0
    %547 = vmatpush.msra.mxu0 0.0
    %548 = vmatpush.msra.mxu0 0.0
    %549 = vmatpush.msra.mxu0 %v123
    %550 = vmatmul.f32.gmra.mxu0 %v532
    %v551 = vpop.f32.mrf.mxu0
    %v552 = vadd.f32 0.0, %v551
    %553 = vdwg.mxu0
    %v555 = vrot.slane %v552, 4
    %v557 = vadd.f32 %v116, %v555
    %v558 = vxor.u32 %v557, 2147483648
    %v559 = vmul.f32 %v558, 1.442695
    %v560 = vpow.pop %v559
    %v561 = vadd.f32 %v560, 1.0
    %v562 = vrcp.pop %v561
    %v563 = vmul.f32 %v561, %v562
    %v564 = vsub.f32 1.0, %v563
    %v565 = vmul.f32 %v562, %v564
    %v566 = vadd.f32 %v562, %v565
    %vm567 = vweird.f32 %v561
    %vm568 = vweird.f32 %v562
    %vm569 = vmor %vm567, %vm568
    %v570 = vsel %vm569, %v562, %v566
    %v571 = vand.u32 2147483647, %v561
    %vm572 = vcmp.eq.f32.partialorder %v571, 8.507059e+37
    %v573 = vand.u32 %v561, 2147483648
    %v574 = vor.u32 1.1754944e-38, %v573
    %v575 = vsel %vm572, %v574, %v570
    %v576 = vmul.f32 1.0, %v575
    %v577 = vtanh.pop %v557
    %v579 = vrot.slane %v521, 6
    %v581 = vmul.f32 %v576, %v579
    %583 = vrot.lane.b32.xlu0 %v577, 118
    %v584 = vpop.permute.xlu0 %583
    %v586 = vmul.f32 %v576, %v584
    %588 = vrot.lane.b32.xlu0 %v586, 5
    %v589 = vpop.permute.xlu0 %588
    %v591 = vadd.f32 %v581, %v589
    %v592 = vtanh.pop %v591
    %594 = vrot.lane.b32.xlu0 %v592, 10
    %v595 = vpop.permute.xlu0 %594
    %v597 = vmul.f32 %v576, %v595
    %v599 = vrot.slane %v597, 4
    %600 = vrot.lane.b32.xlu0 %v599, 113
    %v601 = vpop.permute.xlu0 %600
    %v602 = vsel %vm84, %v601, 0
    %604 = vmatpush.msra.mxu0 0.0
    %605 = vmatpush.msra.mxu0 0.0
    %606 = vmatpush.msra.mxu0 0.0
    %607 = vmatpush.msra.mxu0 0.0
    %608 = vmatpush.msra.mxu0 0.0
    %609 = vmatpush.msra.mxu0 0.0
    %610 = vmatpush.msra.mxu0 0.0
    %611 = vmatpush.msra.mxu0 0.0
    %612 = vmatpush.msra.mxu0 0.0
    %613 = vmatpush.msra.mxu0 0.0
    %614 = vmatpush.msra.mxu0 0.0
    %615 = vmatpush.msra.mxu0 0.0
    %616 = vmatpush.msra.mxu0 0.0
    %617 = vmatpush.msra.mxu0 0.0
    %618 = vmatpush.msra.mxu0 0.0
    %619 = vmatpush.msra.mxu0 %v123
    %620 = vmatmul.f32.gmra.mxu0 %v602
    %v621 = vpop.f32.mrf.mxu0
    %v622 = vadd.f32 0.0, %v621
    %623 = vdwg.mxu0
    %v625 = vrot.slane %v622, 2
    %v627 = vadd.f32 %v116, %v625
    %v628 = vxor.u32 %v627, 2147483648
    %v629 = vmul.f32 %v628, 1.442695
    %v630 = vpow.pop %v629
    %v631 = vadd.f32 %v630, 1.0
    %v632 = vrcp.pop %v631
    %v633 = vmul.f32 %v631, %v632
    %v634 = vsub.f32 1.0, %v633
    %v635 = vmul.f32 %v632, %v634
    %v636 = vadd.f32 %v632, %v635
    %vm637 = vweird.f32 %v631
    %vm638 = vweird.f32 %v632
    %vm639 = vmor %vm637, %vm638
    %v640 = vsel %vm639, %v632, %v636
    %v641 = vand.u32 2147483647, %v631
    %vm642 = vcmp.eq.f32.partialorder %v641, 8.507059e+37
    %v643 = vand.u32 %v631, 2147483648
    %v644 = vor.u32 1.1754944e-38, %v643
    %v645 = vsel %vm642, %v644, %v640
    %v646 = vmul.f32 1.0, %v645
    %v647 = vtanh.pop %v627
    %v649 = vrot.slane %v591, 6
    %v651 = vmul.f32 %v646, %v649
    %653 = vrot.lane.b32.xlu0 %v647, 118
    %v654 = vpop.permute.xlu0 %653
    %v656 = vmul.f32 %v646, %v654
    %658 = vrot.lane.b32.xlu0 %v656, 5
    %v659 = vpop.permute.xlu0 %658
    %v661 = vadd.f32 %v651, %v659
    %v662 = vtanh.pop %v661
    %664 = vrot.lane.b32.xlu0 %v662, 10
    %v665 = vpop.permute.xlu0 %664
    %v667 = vmul.f32 %v646, %v665
    %v668 = vld [vmem:[%s5] sm:$0x1f]
    %v669 = vld [vmem:[%s6] sm:$0x1]
    %v671 = vperm.slane %v669, 0
    %v674 = vrot.slane %v667, 6
    %675 = vrot.lane.b32.xlu0 %v674, 113
    %v676 = vpop.permute.xlu0 %675
    %v677 = vsel %vm84, %v676, 0
    %v680 = vsel %vm91, %v668, 0
    %682 = vmatpush.msra.mxu0 0.0
    %683 = vmatpush.msra.mxu0 0.0
    %684 = vmatpush.msra.mxu0 0.0
    %685 = vmatpush.msra.mxu0 0.0
    %686 = vmatpush.msra.mxu0 0.0
    %687 = vmatpush.msra.mxu0 0.0
    %688 = vmatpush.msra.mxu0 0.0
    %689 = vmatpush.msra.mxu0 0.0
    %690 = vmatpush.msra.mxu0 0.0
    %691 = vmatpush.msra.mxu0 0.0
    %692 = vmatpush.msra.mxu0 0.0
    %693 = vmatpush.msra.mxu0 0.0
    %694 = vmatpush.msra.mxu0 0.0
    %695 = vmatpush.msra.mxu0 0.0
    %696 = vmatpush.msra.mxu0 0.0
    %697 = vmatpush.msra.mxu0 %v680
    %698 = vmatmul.f32.gmra.mxu0 %v677
    %v699 = vpop.f32.mrf.mxu0
    %v700 = vadd.f32 %v671, %v699
    %701 = vdwg.mxu0
    %vm702 = vcmask 9216
    %703 = vst.msk [vmem:[#allocation2] sm:$0x3] %vm702, %v700
    // Predicated region
    $region30: #{tpu_custom_call.1} parent=1 // pred_check
      _
    $region31: #{tpu_custom_call.1} parent=1 // pred_check_branch
      %705 = sbr.rel (0) target = $region33
    $region32: #{tpu_custom_call.1} parent=1 // pred_region
      %707 = vsyncadd [#allocation3], 0
      %s709 = sshll.u32 [#allocation2], 4
      %s710 = int_to_ptr.vmem [resolvable:$true] %s709
      %s711 = sshll.u32 %s7, 4
      %s712 = int_to_ptr.hbm [resolvable:$true] %s711
      %714 = dma.vmem_to_hbm [thread:$0]  %s710, 32, %s712, [#allocation3]
    $region33: #{tpu_custom_call.1} parent=1 // pred_fallthru
      _
    // Predicated region
    $region34: #{tpu_custom_call.1} parent=1 // pred_check
      _
    $region35: #{tpu_custom_call.1} parent=1 // pred_check_branch
      %716 = sbr.rel (0) target = $region37
    $region36: #{tpu_custom_call.1} parent=1 // pred_region
      %718 = dma.done [#allocation3], 32
    $region37: #{tpu_custom_call.1} parent=1 // pred_fallthru
      _
    %719 = vsyncpa [#allocation3], 1

</llo_original>
